<compile_context>
chip_gen: v5e
topology: v5e:2x2
jax: 0.10.0
libtpu: 0.0.40
codegen_flags: <defaults>
</compile_context>

<pallas_src>
import math
import functools

import jax
import jax.numpy as jnp
from jax.experimental import pallas as pl
from jax.experimental.pallas import tpu as pltpu


def _round_up(x: int, m: int) -> int:
    return (x + m - 1) // m * m


def _embed_kernel(ids_ref, table_ref, out_ref, *, scale):
    # ids_ref:   (T, 1) int32 VMEM  -- token ids for this tile (pre-clamped).
    # table_ref: (V_pad, E_pad) VMEM -- full padded embedding table (resident).
    # out_ref:   (T, E_pad) VMEM    -- lane/sublane-dense output tile.
    T = out_ref.shape[0]
    V_pad = table_ref.shape[0]

    ids = ids_ref[...]  # (T, 1)
    onehot = (
        jax.lax.broadcasted_iota(jnp.int32, (T, V_pad), 1) == ids
    ).astype(table_ref.dtype)  # (T, V_pad)

    # Gather-as-matmul on the MXU, accumulate in f32, fuse the sqrt(E) scale.
    acc = jnp.dot(onehot, table_ref[...], preferred_element_type=jnp.float32)
    out_ref[...] = (acc * scale).astype(out_ref.dtype)


def token_embedding(tokens: jax.Array, emb_table: jax.Array,
                    *, tile_tokens: int = 256) -> jax.Array:
    """Equivalent of: nn.Embedding(V, E)(tokens.long()) * sqrt(E)."""
    B, S = tokens.shape
    V, E = emb_table.shape
    N = B * S
    scale = math.sqrt(E)
    out_dtype = emb_table.dtype

    # Padded/tile geometry: lane-dense E, sublane-dense T, sublane-aligned V.
    E_pad = _round_up(E, 128)
    V_pad = _round_up(V, 8)
    T = min(tile_tokens, _round_up(N, 8))
    N_pad = _round_up(N, T)
    G = N_pad // T

    itemsize = jnp.dtype(out_dtype).itemsize
    table_bytes = V_pad * E_pad * itemsize
    # Only the VMEM-resident path is implemented; guard its budget.
    assert table_bytes <= 16 * 1024 * 1024, (
        "embedding table too large for the VMEM-resident fast path")

    table = emb_table
    if (V_pad, E_pad) != (V, E):
        table = jnp.pad(table, ((0, V_pad - V), (0, E_pad - E)))

    # Flatten, clamp (bounds safety), pad to a whole number of tiles, and
    # present ids as a (N_pad, 1) column so the kernel sees a (T, 1) block.
    ids = jnp.clip(tokens.reshape(-1).astype(jnp.int32), 0, V - 1)
    if N_pad != N:
        ids = jnp.pad(ids, (0, N_pad - N))
    ids = ids.reshape(N_pad, 1)

    # VMEM budget: resident table + double-buffered (T, E_pad) output + ids.
    out_tile_bytes = T * E_pad * itemsize
    vmem_limit = int(min(
        max(2 * table_bytes + 4 * out_tile_bytes + (1 << 20), 16 << 20),
        96 << 20))

    out = pl.pallas_call(
        functools.partial(_embed_kernel, scale=scale),
        out_shape=jax.ShapeDtypeStruct((N_pad, E_pad), out_dtype),
        grid_spec=pltpu.PrefetchScalarGridSpec(
            num_scalar_prefetch=0,
            grid=(G,),
            in_specs=[
                # Per-tile token ids.
                pl.BlockSpec((T, 1), lambda i: (i, 0)),
                # Full table, constant index_map -> stays resident in VMEM.
                pl.BlockSpec((V_pad, E_pad), lambda i: (0, 0)),
            ],
            out_specs=pl.BlockSpec((T, E_pad), lambda i: (i, 0)),
        ),
        compiler_params=pltpu.CompilerParams(
            # Disjoint output tiles per step -> parallel is legal; lets v7x
            # shard the token axis across its 2 TensorCores.
            dimension_semantics=("parallel",),
            vmem_limit_bytes=vmem_limit,
        ),
    )(ids, table)

    return out[:N, :E].reshape(B, S, E)


if __name__ == "__main__":
    key = jax.random.PRNGKey(0)
    k_tok, k_emb = jax.random.split(key)

    vocab_size = 11
    emb_size = 32
    batch, seq = 2, 8

    # Deterministic "parameter" init (nn.Embedding weight ~ N(0, 1)).
    emb_table = jax.random.normal(k_emb, (vocab_size, emb_size), dtype=jnp.float32)
    tokens = jax.random.randint(k_tok, (batch, seq), 0, vocab_size, dtype=jnp.int32)

    out = token_embedding(tokens, emb_table)
    jax.block_until_ready(out)

    # Reference check against plain-JAX semantics of the PyTorch module.
    ref = jnp.take(emb_table, tokens, axis=0) * math.sqrt(emb_size)
    assert out.shape == (batch, seq, emb_size)
    assert jnp.allclose(out, ref, atol=1e-6, rtol=1e-6)

    print("KERNEL_OK")
</pallas_src>

<mosaic_0001>
module attributes {stable_mosaic.version = 11 : i64} {
  func.func @_embed_kernel(%arg0: i32, %arg1: memref<16x1xi32, #tpu.memory_space<vmem>>, %arg2: memref<16x128xf32, #tpu.memory_space<vmem>>, %arg3: memref<16x128xf32, #tpu.memory_space<vmem>>) attributes {dimension_semantics = [#tpu.dimension_semantics<parallel>], iteration_bounds = array<i64: 1>, scalar_prefetch = 0 : i64, scratch_operands = 0 : i64, tpu.core_type = #tpu.core_type<tc>, window_params = [{transform_indices = @transform_0, window_bounds = array<i64: 16, 1>}, {pipeline_mode = #tpu.pipeline_mode<synchronous>, transform_indices = @transform_1, window_bounds = array<i64: 16, 128>}, {transform_indices = @transform_2, window_bounds = array<i64: 16, 128>}]} {
    %c0 = arith.constant 0 : index
    %c0_0 = arith.constant 0 : index
    %0 = vector.load %arg1[%c0, %c0_0] : memref<16x1xi32, #tpu.memory_space<vmem>>, vector<16x1xi32>
    %1 = tpu.iota {dimensions = array<i32: 1>} : vector<16x16xi32>
    %2 = vector.broadcast %0 : vector<16x1xi32> to vector<16x16xi32>
    %3 = arith.cmpi eq, %1, %2 : vector<16x16xi32>
    %4 = arith.extui %3 : vector<16x16xi1> to vector<16x16xi32>
    %5 = arith.sitofp %4 : vector<16x16xi32> to vector<16x16xf32>
    %c0_1 = arith.constant 0 : index
    %c0_2 = arith.constant 0 : index
    %6 = vector.load %arg2[%c0_1, %c0_2] : memref<16x128xf32, #tpu.memory_space<vmem>>, vector<16x128xf32>
    %cst = arith.constant dense<0.000000e+00> : vector<16x128xf32>
    %7 = tpu.matmul %5, %6, %cst {dimension_numbers = #tpu.dot_dimension_numbers<[1], [0], [0], [1], [0, 0, 1, 1], [], []>} : vector<16x16xf32>, vector<16x128xf32>, vector<16x128xf32> -> vector<16x128xf32>
    %cst_3 = arith.constant 5.65685415 : f32
    %8 = vector.broadcast %cst_3 : f32 to vector<16x128xf32>
    %9 = arith.mulf %7, %8 : vector<16x128xf32>
    %c0_4 = arith.constant 0 : index
    %c0_5 = arith.constant 0 : index
    %10 = vector.load %arg3[%c0_4, %c0_5] : memref<16x128xf32, #tpu.memory_space<vmem>>, vector<16x128xf32>
    tpu.vector_store %arg3[%c0_4, %c0_5], %9 {strides = array<i32>} : memref<16x128xf32, #tpu.memory_space<vmem>>, vector<16x128xf32>,
    return
  }
  func.func @transform_0(%arg0: i32) -> (i32, i32) {
    %c0_i32 = arith.constant 0 : i32
    %c0_i32_0 = arith.constant 0 : i32
    return %arg0, %c0_i32 : i32, i32
  }
  func.func @transform_1(%arg0: i32) -> (i32, i32) {
    %c0_i32 = arith.constant 0 : i32
    %c0_i32_0 = arith.constant 0 : i32
    %c0_i32_1 = arith.constant 0 : i32
    return %c0_i32, %c0_i32_0 : i32, i32
  }
  func.func @transform_2(%arg0: i32) -> (i32, i32) {
    %c0_i32 = arith.constant 0 : i32
    %c0_i32_0 = arith.constant 0 : i32
    return %arg0, %c0_i32 : i32, i32
  }
}

</mosaic_0001>

<llo_original>
// kernel: tpu_custom_call.1
$region0: #{tpu_custom_call.1}
  #allocation0 [shape = 'u32[]', space=smem, size = 0x4, offset = 0x4, fixed_abs, tag = 'smem constant byte address 0x4 - core index']
  #allocation1 [shape = 'u32[72,128]{1,0:T(1,128)}', space=vmem, size = 0x9000, scoped, tag = 'internal scratch']
  %s0 = inlined_call_operand.vmem [shape: s32[16,1], index: 0, kind: input, shape index: {}]
  %s1 = inlined_call_operand.vmem [shape: f32[16,128], index: 1, kind: input, shape index: {}]
  %s2 = inlined_call_operand.hbm [shape: f32[16,128], index: 2, kind: output, shape index: {}]
  %s3 = sld [smem:[#allocation0]]
  $region18: #{tpu_custom_call.1} parent=0
    _
  %s5 = ssub.s32 1, %s3
  %s6 = scalar_select 0, %s5, %s3
  $region1: #{tpu_custom_call.1} parent=0
    #allocation2 [shape = 'u8[8192]{0}', space=vmem, size = 0x2000, scoped, tag = 'output window, operand 0, single buffered']
    #allocation3 [shape = 's32[1]{0}', space=sflag, size = 0x4, scoped, tag = 'scoped memory for tpu_custom_call.1']
    %7 = vsyncpa [#allocation3], 0
    // Predicated region
    $region2: #{tpu_custom_call.1} parent=1 // pred_check
      _
    $region3: #{tpu_custom_call.1} parent=1 // pred_check_branch
      %9 = sbr.rel (0) target = $region5
    $region4: #{tpu_custom_call.1} parent=1 // pred_region
      _
    $region5: #{tpu_custom_call.1} parent=1 // pred_fallthru
      _
    // Predicated region
    $region6: #{tpu_custom_call.1} parent=1 // pred_check
      _
    $region7: #{tpu_custom_call.1} parent=1 // pred_check_branch
      %11 = sbr.rel (0) target = $region9
    $region8: #{tpu_custom_call.1} parent=1 // pred_region
      _
    $region9: #{tpu_custom_call.1} parent=1 // pred_fallthru
      _
    %v12 = vld [vmem:[%s0] sm:$0xff]
    %v13 = vld [vmem:[%s0 + $0x8] sm:$0xff]
    %v14 = vlaneseq
    %v15 = vand.u32 %v14, 127
    %16 = vset.pattern.permute.xlu0 0
    %17 = vperm.xlu0 %16, %v12
    %v18 = vpop.permute.xlu0 %17
    %19 = vset.pattern.permute.xlu0 0
    %20 = vperm.xlu0 %19, %v13
    %v21 = vpop.permute.xlu0 %20
    %vm22 = vcmp.eq.s32.totalorder %v15, %v18
    %vm23 = vcmp.eq.s32.totalorder %v15, %v21
    %v24 = vsel %vm22, 1, 0
    %v25 = vsel %vm23, 1, 0
    %v26 = vcvt.s32.f32 %v24
    %v27 = vcvt.s32.f32 %v25
    %v28 = vld [vmem:[%s1] sm:$0xff]
    %v29 = vld [vmem:[%s1 + $0x8] sm:$0xff]
    %vm30 = vcmask 130048
    %v32 = vsel %vm30, %v26, 0
    %v35 = vsel %vm30, %v27, 0
    %37 = vmatpush.msra.mxu0 0.0
    %38 = vmatpush.msra.mxu0 0.0
    %39 = vmatpush.msra.mxu0 0.0
    %40 = vmatpush.msra.mxu0 0.0
    %41 = vmatpush.msra.mxu0 0.0
    %42 = vmatpush.msra.mxu0 0.0
    %43 = vmatpush.msra.mxu0 0.0
    %44 = vmatpush.msra.mxu0 0.0
    %45 = vmatpush.msra.mxu0 0.0
    %46 = vmatpush.msra.mxu0 0.0
    %47 = vmatpush.msra.mxu0 0.0
    %48 = vmatpush.msra.mxu0 0.0
    %49 = vmatpush.msra.mxu0 0.0
    %50 = vmatpush.msra.mxu0 0.0
    %51 = vmatpush.msra.mxu0 %v29
    %52 = vmatpush.msra.mxu0 %v28
    %53 = vmatmul.f32.gmra.mxu0 %v32
    %v54 = vpop.f32.mrf.mxu0
    %v55 = vadd.f32 0.0, %v54
    %56 = vmatmul.f32.gmra.mxu0 %v35
    %v57 = vpop.f32.mrf.mxu0
    %v58 = vadd.f32 0.0, %v57
    %59 = vdwg.mxu0
    %v60 = vmul.f32 %v55, 5.656854
    %v61 = vmul.f32 %v58, 5.656854
    %62 = vst [vmem:[#allocation2] sm:$0xff] %v60
    %63 = vst [vmem:[#allocation2 + $0x8] sm:$0xff] %v61
    // Predicated region
    $region10: #{tpu_custom_call.1} parent=1 // pred_check
      _
    $region11: #{tpu_custom_call.1} parent=1 // pred_check_branch
      %65 = sbr.rel (0) target = $region13
    $region12: #{tpu_custom_call.1} parent=1 // pred_region
      %67 = vsyncadd [#allocation3], 0
      %s68 = sshll.u32 [#allocation2], 4
      %s69 = int_to_ptr.vmem [resolvable:$true] %s68
      %s70 = sshll.u32 %s2, 4
      %s71 = int_to_ptr.hbm [resolvable:$true] %s70
      %76 = dma.vmem_to_hbm [thread:$0]  %s69, 256, %s71, [#allocation3], 128, 128, 8
    $region13: #{tpu_custom_call.1} parent=1 // pred_fallthru
      _
    // Predicated region
    $region14: #{tpu_custom_call.1} parent=1 // pred_check
      _
    $region15: #{tpu_custom_call.1} parent=1 // pred_check_branch
      %78 = sbr.rel (0) target = $region17
    $region16: #{tpu_custom_call.1} parent=1 // pred_region
      %80 = dma.done [#allocation3], 256
    $region17: #{tpu_custom_call.1} parent=1 // pred_fallthru
      _
    %81 = vsyncpa [#allocation3], 1

</llo_original>
